<compile_context>
chip_gen: v6e
topology: v6e:2x2x1
jax: 0.10.0
libtpu: 0.0.40
codegen_flags: <defaults>
</compile_context>

<pallas_src>
import jax
import jax.numpy as jnp
from jax.experimental import pallas as pl
from jax.experimental.pallas import tpu as pltpu


def _round_up(a, b):
    return (a + b - 1) // b * b


# ---------------------------------------------------------------------------
# Kernel:  out = y1 + relu(y2 + b2) * scale + shift
# where [y1; y2] = W_all @ patches_tile  (one MXU matmul, fp32 accumulation),
#       scale = resweight * gamma * rstd,
#       shift = b1 + resweight * (beta - mean * gamma * rstd).
# ---------------------------------------------------------------------------
def convblock_kernel(p_ref, w_ref, c_ref, o_ref):
    # p_ref: (CK, TL)  compute dtype
    # w_ref: (2*COP, CK) compute dtype   (COP = C_out padded to multiple of 8)
    # c_ref: (COP, 3) f32  -> columns: [b2, scale, shift]
    y = jnp.dot(w_ref[...], p_ref[...],
                preferred_element_type=jnp.float32)          # (2*COP, TL) f32
    cop = o_ref.shape[0]
    c = c_ref[...]
    b2, scale, shift = c[:, 0:1], c[:, 1:2], c[:, 2:3]
    y1 = y[:cop, :]                                          # conv1 (bias in shift)
    y2 = jnp.maximum(y[cop:, :] + b2, 0.0)                   # conv2 -> ReLU
    o_ref[...] = (y1 + y2 * scale + shift).astype(o_ref.dtype)


def conv_block_forward(x, params, stride, *, tile_l=16384,
                       compute_dtype=jnp.bfloat16, out_dtype=None,
                       bn_eps=1e-5):
    """x: (N, C_in, L) -> (N, C_out, L_out), eval-mode ConvBlock forward."""
    N, C_in, L = x.shape
    C_out, _, K = params["w1"].shape
    L_out = (L - K) // stride + 1
    CK = C_in * K
    cop = _round_up(C_out, 8)
    if out_dtype is None:
        out_dtype = compute_dtype

    # ---- im2col via K strided slices (no gather), lane axis = N*L_out ------
    rf = (L_out - 1) * stride + 1
    taps = [x[:, :, k:k + rf:stride] for k in range(K)]       # K x (N,C_in,L_out)
    patches = jnp.stack(taps, axis=2).reshape(N, CK, L_out)   # index = c_in*K + k
    patches = patches.transpose(1, 0, 2).reshape(CK, N * L_out)

    total = N * L_out
    if total <= tile_l:
        tl = _round_up(total, 128)
    else:
        tl = _round_up(tile_l, 128)
    lane_total = _round_up(total, tl)
    if lane_total > total:
        patches = jnp.pad(patches, ((0, 0), (0, lane_total - total)))
    patches = patches.astype(compute_dtype)
    num_tiles = lane_total // tl

    # ---- fuse both conv weight matrices into one MXU LHS (sublane-padded) --
    w1m = params["w1"].reshape(C_out, CK)
    w2m = params["w2"].reshape(C_out, CK)
    pad = cop - C_out
    if pad:
        z = jnp.zeros((pad, CK), w1m.dtype)
        w1m = jnp.concatenate([w1m, z], axis=0)
        w2m = jnp.concatenate([w2m, z], axis=0)
    w_all = jnp.concatenate([w1m, w2m], axis=0).astype(compute_dtype)  # (2*cop, CK)

    # ---- fold BN (eval) + resweight + conv1 bias into (b2, scale, shift) ---
    rstd = 1.0 / jnp.sqrt(params["bn_var"].astype(jnp.float32) + bn_eps)
    rw = params["resweight"][0].astype(jnp.float32)
    scale = rw * params["bn_gamma"] * rstd
    shift = params["b1"] + rw * (params["bn_beta"]
                                 - params["bn_mean"] * params["bn_gamma"] * rstd)
    consts = jnp.stack([params["b2"], scale, shift], axis=1).astype(jnp.float32)
    if pad:
        consts = jnp.pad(consts, ((0, pad), (0, 0)))           # (cop, 3)

    # ---- VMEM budget: 2x double-buffered tiles + resident weights ----------
    in_b = jnp.dtype(compute_dtype).itemsize
    out_b = jnp.dtype(out_dtype).itemsize
    step_bytes = tl * (CK * in_b + cop * out_b)
    resident_bytes = 2 * cop * CK * in_b + cop * 128 * 4
    vmem_limit = max(32 * 1024 * 1024, int(2 * (2 * step_bytes + resident_bytes)))
    vmem_limit = min(vmem_limit, 100 * 1024 * 1024)

    out = pl.pallas_call(
        convblock_kernel,
        out_shape=jax.ShapeDtypeStruct((cop, lane_total), out_dtype),
        grid_spec=pltpu.PrefetchScalarGridSpec(
            num_scalar_prefetch=0,
            grid=(num_tiles,),
            in_specs=[
                # per-tile (CK, TL) patch slab, lane-dense
                pl.BlockSpec((CK, tl), lambda j: (0, j)),
                # resident weights / folded constants (constant block index)
                pl.BlockSpec((2 * cop, CK), lambda j: (0, 0)),
                pl.BlockSpec((cop, 3), lambda j: (0, 0)),
            ],
            out_specs=pl.BlockSpec((cop, tl), lambda j: (0, j)),
        ),
        compiler_params=pltpu.CompilerParams(
            dimension_semantics=("parallel",),
            vmem_limit_bytes=vmem_limit,
        ),
    )(patches, w_all, consts)

    # strip channel/lane padding, unfold batch -> PyTorch layout (N, C_out, L_out)
    out = out[:C_out, :total].reshape(C_out, N, L_out).transpose(1, 0, 2)
    return out


# ---------------------------------------------------------------------------
# Pure-JAX reference (same eval-mode math) for correctness checks
# ---------------------------------------------------------------------------
def conv1d_ref(x, w, b, stride):
    out = jax.lax.conv_general_dilated(
        x, w, window_strides=(stride,), padding="VALID",
        dimension_numbers=("NCH", "OIH", "NCH"))
    return out + b[None, :, None]


def conv_block_ref(x, params, stride, bn_eps=1e-5):
    y1 = conv1d_ref(x, params["w1"], params["b1"], stride)
    y2 = conv1d_ref(x, params["w2"], params["b2"], stride)
    y2 = jnp.maximum(y2, 0.0)
    rstd = 1.0 / jnp.sqrt(params["bn_var"] + bn_eps)
    y2 = (y2 - params["bn_mean"][None, :, None]) * rstd[None, :, None]
    y2 = y2 * params["bn_gamma"][None, :, None] + params["bn_beta"][None, :, None]
    return y1 + y2 * params["resweight"][0]


def _make_params(key, C_in, C_out, K):
    k1, k2, k3, k4 = jax.random.split(key, 4)
    return {
        "w1": 0.1 * jax.random.normal(k1, (C_out, C_in, K), jnp.float32),
        "b1": 0.1 * jax.random.normal(k2, (C_out,), jnp.float32),
        "w2": 0.1 * jax.random.normal(k3, (C_out, C_in, K), jnp.float32),
        "b2": 0.1 * jax.random.normal(k4, (C_out,), jnp.float32),
        "bn_gamma": jnp.ones((C_out,), jnp.float32),
        "bn_beta": jnp.zeros((C_out,), jnp.float32),
        "bn_mean": jnp.zeros((C_out,), jnp.float32),
        "bn_var": jnp.ones((C_out,), jnp.float32),
        # nn.Parameter(torch.FloatTensor([0])) -> shape (1,); nonzero so the
        # residual block path is actually exercised.
        "resweight": jnp.array([0.5], jnp.float32),
    }


if __name__ == "__main__":
    key = jax.random.PRNGKey(0)
    kp1, kx1, kp2, kx2 = jax.random.split(key, 4)

    # --- case A: shapes consistent with the module's forward (small) --------
    N, C_in, L = 2, 4, 16
    C_out, K, STRIDE = 8, 3, 2
    params = _make_params(kp1, C_in, C_out, K)
    x = jax.random.normal(kx1, (N, C_in, L), jnp.float32)
    ref = conv_block_ref(x, params, STRIDE)
    L_out = (L - K) // STRIDE + 1

    # fp32 compute path (tolerance allows MXU default-precision rounding)
    out_f32 = jax.block_until_ready(
        conv_block_forward(x, params, STRIDE, compute_dtype=jnp.float32))
    assert out_f32.shape == (N, C_out, L_out), out_f32.shape
    assert jnp.allclose(out_f32, ref, atol=5e-3, rtol=5e-3), "fp32 mismatch vs reference"

    # default bf16 MXU path (f32 accumulation, bf16 output)
    out_bf16 = jax.block_until_ready(conv_block_forward(x, params, STRIDE))
    assert out_bf16.shape == (N, C_out, L_out), out_bf16.shape
    assert jnp.allclose(out_bf16.astype(jnp.float32), ref, atol=3e-2, rtol=3e-2), \
        "bf16 mismatch vs reference"

    # --- case B: non-multiple-of-8 C_out, multi-tile lane grid --------------
    N2, C_in2, L2 = 3, 3, 100
    C_out2, K2, STRIDE2 = 6, 5, 1
    params2 = _make_params(kp2, C_in2, C_out2, K2)
    x2 = jax.random.normal(kx2, (N2, C_in2, L2), jnp.float32)
    ref2 = conv_block_ref(x2, params2, STRIDE2)
    L_out2 = (L2 - K2) // STRIDE2 + 1
    out2 = jax.block_until_ready(
        conv_block_forward(x2, params2, STRIDE2, tile_l=128,
                           compute_dtype=jnp.float32))
    assert out2.shape == (N2, C_out2, L_out2), out2.shape
    assert jnp.allclose(out2, ref2, atol=5e-3, rtol=5e-3), "case B mismatch vs reference"

    print("KERNEL_OK")
</pallas_src>

<mosaic_0001>
module attributes {stable_mosaic.version = 11 : i64} {
  func.func @convblock_kernel(%arg0: i32, %arg1: memref<12x128xf32, #tpu.memory_space<vmem>>, %arg2: memref<16x12xf32, #tpu.memory_space<vmem>>, %arg3: memref<8x3xf32, #tpu.memory_space<vmem>>, %arg4: memref<8x128xf32, #tpu.memory_space<vmem>>) attributes {dimension_semantics = [#tpu.dimension_semantics<parallel>], iteration_bounds = array<i64: 1>, scalar_prefetch = 0 : i64, scratch_operands = 0 : i64, tpu.core_type = #tpu.core_type<tc>, window_params = [{transform_indices = @transform_0, window_bounds = array<i64: 12, 128>}, {pipeline_mode = #tpu.pipeline_mode<synchronous>, transform_indices = @transform_1, window_bounds = array<i64: 16, 12>}, {pipeline_mode = #tpu.pipeline_mode<synchronous>, transform_indices = @transform_2, window_bounds = array<i64: 8, 3>}, {transform_indices = @transform_3, window_bounds = array<i64: 8, 128>}]} {
    %c0 = arith.constant 0 : index
    %c0_0 = arith.constant 0 : index
    %0 = vector.load %arg2[%c0, %c0_0] : memref<16x12xf32, #tpu.memory_space<vmem>>, vector<16x12xf32>
    %c0_1 = arith.constant 0 : index
    %c0_2 = arith.constant 0 : index
    %1 = vector.load %arg1[%c0_1, %c0_2] : memref<12x128xf32, #tpu.memory_space<vmem>>, vector<12x128xf32>
    %cst = arith.constant dense<0.000000e+00> : vector<16x128xf32>
    %2 = tpu.matmul %0, %1, %cst {dimension_numbers = #tpu.dot_dimension_numbers<[1], [0], [0], [1], [0, 0, 1, 1], [], []>} : vector<16x12xf32>, vector<12x128xf32>, vector<16x128xf32> -> vector<16x128xf32>
    %c0_3 = arith.constant 0 : index
    %c0_4 = arith.constant 0 : index
    %3 = vector.load %arg3[%c0_3, %c0_4] : memref<8x3xf32, #tpu.memory_space<vmem>>, vector<8x3xf32>
    %4 = vector.extract_strided_slice %3 {offsets = [0, 0], sizes = [8, 1], strides = [1, 1]} : vector<8x3xf32> to vector<8x1xf32>
    %5 = vector.extract_strided_slice %3 {offsets = [0, 1], sizes = [8, 1], strides = [1, 1]} : vector<8x3xf32> to vector<8x1xf32>
    %6 = vector.extract_strided_slice %3 {offsets = [0, 2], sizes = [8, 1], strides = [1, 1]} : vector<8x3xf32> to vector<8x1xf32>
    %7 = vector.extract_strided_slice %2 {offsets = [0, 0], sizes = [8, 128], strides = [1, 1]} : vector<16x128xf32> to vector<8x128xf32>
    %8 = vector.extract_strided_slice %2 {offsets = [8, 0], sizes = [8, 128], strides = [1, 1]} : vector<16x128xf32> to vector<8x128xf32>
    %9 = vector.broadcast %4 : vector<8x1xf32> to vector<8x128xf32>
    %10 = arith.addf %8, %9 : vector<8x128xf32>
    %cst_5 = arith.constant 0.000000e+00 : f32
    %11 = vector.broadcast %cst_5 : f32 to vector<8x128xf32>
    %12 = arith.maximumf %10, %11 : vector<8x128xf32>
    %13 = vector.broadcast %5 : vector<8x1xf32> to vector<8x128xf32>
    %14 = arith.mulf %12, %13 : vector<8x128xf32>
    %15 = arith.addf %7, %14 : vector<8x128xf32>
    %16 = vector.broadcast %6 : vector<8x1xf32> to vector<8x128xf32>
    %17 = arith.addf %15, %16 : vector<8x128xf32>
    %c0_6 = arith.constant 0 : index
    %c0_7 = arith.constant 0 : index
    %18 = vector.load %arg4[%c0_6, %c0_7] : memref<8x128xf32, #tpu.memory_space<vmem>>, vector<8x128xf32>
    tpu.vector_store %arg4[%c0_6, %c0_7], %17 {strides = array<i32>} : memref<8x128xf32, #tpu.memory_space<vmem>>, vector<8x128xf32>,
    return
  }
  func.func @transform_0(%arg0: i32) -> (i32, i32) {
    %c0_i32 = arith.constant 0 : i32
    %c0_i32_0 = arith.constant 0 : i32
    return %c0_i32, %arg0 : i32, i32
  }
  func.func @transform_1(%arg0: i32) -> (i32, i32) {
    %c0_i32 = arith.constant 0 : i32
    %c0_i32_0 = arith.constant 0 : i32
    %c0_i32_1 = arith.constant 0 : i32
    return %c0_i32, %c0_i32_0 : i32, i32
  }
  func.func @transform_2(%arg0: i32) -> (i32, i32) {
    %c0_i32 = arith.constant 0 : i32
    %c0_i32_0 = arith.constant 0 : i32
    %c0_i32_1 = arith.constant 0 : i32
    return %c0_i32, %c0_i32_0 : i32, i32
  }
  func.func @transform_3(%arg0: i32) -> (i32, i32) {
    %c0_i32 = arith.constant 0 : i32
    %c0_i32_0 = arith.constant 0 : i32
    return %c0_i32, %arg0 : i32, i32
  }
}

</mosaic_0001>

<llo_original>
// kernel: tpu_custom_call.1
$region0: #{tpu_custom_call.1}
  #allocation0 [shape = 'u32[]', space=smem, size = 0x4, offset = 0x4, fixed_abs, tag = 'smem constant byte address 0x4 - core index']
  #allocation1 [shape = 'u32[144,128]{1,0:T(1,128)}', space=vmem, size = 0x12000, scoped, tag = 'internal scratch']
  %s0 = inlined_call_operand.hbm [shape: f32[12,128], index: 0, kind: input, shape index: {}]
  %s1 = inlined_call_operand.hbm [shape: f32[16,12], index: 1, kind: input, shape index: {}]
  %s2 = inlined_call_operand.vmem [shape: f32[8,3], index: 2, kind: input, shape index: {}]
  %s3 = inlined_call_operand.hbm [shape: f32[8,128], index: 3, kind: output, shape index: {}]
  %s4 = sld [smem:[#allocation0]]
  $region30: #{tpu_custom_call.1} parent=0
    _
  %s6 = ssub.s32 1, %s4
  %s7 = scalar_select 0, %s6, %s4
  $region1: #{tpu_custom_call.1} parent=0
    #allocation2 [shape = 'u8[8192]{0}', space=vmem, size = 0x2000, scoped, tag = 'input window, operand 0, single buffered']
    #allocation3 [shape = 's32[1]{0}', space=sflag, size = 0x4, scoped, tag = 'scoped memory for tpu_custom_call.1']
    #allocation4 [shape = 's32[1]{0}', space=sflag, size = 0x4, scoped, tag = 'scoped memory for tpu_custom_call.1']
    #allocation5 [shape = 'u8[8192]{0}', space=vmem, size = 0x2000, scoped, tag = 'input window, operand 1, single buffered']
    #allocation6 [shape = 's32[1]{0}', space=sflag, size = 0x4, scoped, tag = 'scoped memory for tpu_custom_call.1']
    #allocation7 [shape = 'u8[4096]{0}', space=vmem, size = 0x1000, scoped, tag = 'output window, operand 0, single buffered']
    %8 = vsyncpa [#allocation3], 0
    %9 = vsyncpa [#allocation6], 0
    %10 = vsyncpa [#allocation4], 0
    // Predicated region
    $region2: #{tpu_custom_call.1} parent=1 // pred_check
      _
    $region3: #{tpu_custom_call.1} parent=1 // pred_check_branch
      %12 = sbr.rel (0) target = $region5
    $region4: #{tpu_custom_call.1} parent=1 // pred_region
      %s14 = ssub.s32 256, 256
      %15 = vsyncadd [#allocation3], %s14
      %s16 = sshll.u32 [#allocation2], 4
      %s17 = int_to_ptr.vmem [resolvable:$true] %s16
      %22 = dma.hbm_to_vmem [thread:$0]  %s0, 256, %s17, [#allocation3], 128, 128, 8
    $region5: #{tpu_custom_call.1} parent=1 // pred_fallthru
      _
    // Predicated region
    $region6: #{tpu_custom_call.1} parent=1 // pred_check
      _
    $region7: #{tpu_custom_call.1} parent=1 // pred_check_branch
      %24 = sbr.rel (0) target = $region9
    $region8: #{tpu_custom_call.1} parent=1 // pred_region
      %s26 = ssub.s32 256, 256
      %27 = vsyncadd [#allocation6], %s26
      %s28 = sshll.u32 [#allocation5], 4
      %s29 = int_to_ptr.vmem [resolvable:$true] %s28
      %34 = dma.hbm_to_vmem [thread:$0]  %s1, 256, %s29, [#allocation6], 128, 128, 8
    $region9: #{tpu_custom_call.1} parent=1 // pred_fallthru
      _
    // Predicated region
    $region10: #{tpu_custom_call.1} parent=1 // pred_check
      _
    $region11: #{tpu_custom_call.1} parent=1 // pred_check_branch
      %36 = sbr.rel (0) target = $region13
    $region12: #{tpu_custom_call.1} parent=1 // pred_region
      _
    $region13: #{tpu_custom_call.1} parent=1 // pred_fallthru
      _
    // Predicated region
    $region14: #{tpu_custom_call.1} parent=1 // pred_check
      _
    $region15: #{tpu_custom_call.1} parent=1 // pred_check_branch
      %38 = sbr.rel (0) target = $region17
    $region16: #{tpu_custom_call.1} parent=1 // pred_region
      %39 = dma.done [#allocation3], 256
    $region17: #{tpu_custom_call.1} parent=1 // pred_fallthru
      _
    // Predicated region
    $region18: #{tpu_custom_call.1} parent=1 // pred_check
      _
    $region19: #{tpu_custom_call.1} parent=1 // pred_check_branch
      %41 = sbr.rel (0) target = $region21
    $region20: #{tpu_custom_call.1} parent=1 // pred_region
      %42 = dma.done [#allocation6], 256
    $region21: #{tpu_custom_call.1} parent=1 // pred_fallthru
      _
    %v43 = vld [vmem:[#allocation5] sm:$0xff]
    %v44 = vld [vmem:[#allocation5 + $0x8] sm:$0xff]
    %v45 = vld [vmem:[#allocation2] sm:$0xff]
    %v46 = vld [vmem:[#allocation2 + $0x8] sm:$0xf]
    %vm47 = vcmask 97280
    %v49 = vsel %vm47, %v43, 0
    %v52 = vsel %vm47, %v44, 0
    %vm54 = vcmask 1043456
    %v56 = vsel %vm54, %v46, 0
    %58 = vmatprep.subr.mxu0 0.0
    %59 = vmatpush1.msra.mxu0 0.0
    %60 = vmatprep.subr.mxu0 0.0
    %61 = vmatpush1.msra.mxu0 0.0
    %62 = vmatprep.subr.mxu0 0.0
    %63 = vmatpush1.msra.mxu0 0.0
    %64 = vmatprep.subr.mxu0 0.0
    %65 = vmatpush1.msra.mxu0 0.0
    %66 = vmatprep.subr.mxu0 0.0
    %67 = vmatpush1.msra.mxu0 0.0
    %68 = vmatprep.subr.mxu0 0.0
    %69 = vmatpush1.msra.mxu0 0.0
    %70 = vmatprep.subr.mxu0 0.0
    %71 = vmatpush1.msra.mxu0 0.0
    %72 = vmatprep.subr.mxu0 0.0
    %73 = vmatpush1.msra.mxu0 0.0
    %74 = vmatprep.subr.mxu0 0.0
    %75 = vmatpush1.msra.mxu0 0.0
    %76 = vmatprep.subr.mxu0 0.0
    %77 = vmatpush1.msra.mxu0 0.0
    %78 = vmatprep.subr.mxu0 0.0
    %79 = vmatpush1.msra.mxu0 0.0
    %80 = vmatprep.subr.mxu0 0.0
    %81 = vmatpush1.msra.mxu0 0.0
    %82 = vmatprep.subr.mxu0 0.0
    %83 = vmatpush1.msra.mxu0 0.0
    %84 = vmatprep.subr.mxu0 0.0
    %85 = vmatpush1.msra.mxu0 0.0
    %86 = vmatprep.subr.mxu0 0.0
    %87 = vmatpush1.msra.mxu0 %v56
    %88 = vmatprep.subr.mxu0 0.0
    %89 = vmatpush1.msra.mxu0 %v45
    %90 = vmatprep.subr.mxu0 0.0
    %91 = vmatpush2.msra.mxu0 0.0
    %92 = vmatprep.subr.mxu0 0.0
    %93 = vmatpush2.msra.mxu0 0.0
    %94 = vmatprep.subr.mxu0 0.0
    %95 = vmatpush2.msra.mxu0 0.0
    %96 = vmatprep.subr.mxu0 0.0
    %97 = vmatpush2.msra.mxu0 0.0
    %98 = vmatprep.subr.mxu0 0.0
    %99 = vmatpush2.msra.mxu0 0.0
    %100 = vmatprep.subr.mxu0 0.0
    %101 = vmatpush2.msra.mxu0 0.0
    %102 = vmatprep.subr.mxu0 0.0
    %103 = vmatpush2.msra.mxu0 0.0
    %104 = vmatprep.subr.mxu0 0.0
    %105 = vmatpush2.msra.mxu0 0.0
    %106 = vmatprep.subr.mxu0 0.0
    %107 = vmatpush2.msra.mxu0 0.0
    %108 = vmatprep.subr.mxu0 0.0
    %109 = vmatpush2.msra.mxu0 0.0
    %110 = vmatprep.subr.mxu0 0.0
    %111 = vmatpush2.msra.mxu0 0.0
    %112 = vmatprep.subr.mxu0 0.0
    %113 = vmatpush2.msra.mxu0 0.0
    %114 = vmatprep.subr.mxu0 0.0
    %115 = vmatpush2.msra.mxu0 0.0
    %116 = vmatprep.subr.mxu0 0.0
    %117 = vmatpush2.msra.mxu0 0.0
    %118 = vmatprep.subr.mxu0 0.0
    %119 = vmatpush2.msra.mxu0 0.0
    %120 = vmatprep.subr.mxu0 0.0
    %121 = vmatpush2.msra.mxu0 0.0
    %122 = vmatprep.mubr.f32.mxu0 0.0
    %123 = vmatmul.mubr.f32.gmra.mxu0 %v49
    %v124 = vpop.f32.mrf.mxu0
    %v125 = vadd.f32 0.0, %v124
    %v126 = vpop.f32.mrf.mxu0
    %127 = vmatprep.mubr.f32.mxu0 0.0
    %128 = vmatmul.mubr.f32.gmra.mxu0 %v52
    %v129 = vpop.f32.mrf.mxu0
    %v130 = vadd.f32 0.0, %v129
    %v131 = vpop.f32.mrf.mxu0
    %132 = vdwg.mxu0
    %v133 = vld [vmem:[%s2] sm:$0xff]
    %135 = vset.pattern.permute.xlu0 0
    %136 = vperm.xlu0 %135, %v133
    %v137 = vpop.permute.xlu0 %136
    %v139 = vadd.f32 %v130, %v137
    %v140 = vmax.f32 %v139, 0.0
    %141 = vset.pattern.permute.xlu0 1
    %142 = vperm.xlu0 %141, %v133
    %v143 = vpop.permute.xlu0 %142
    %v145 = vmul.f32 %v140, %v143
    %v146 = vadd.f32 %v125, %v145
    %147 = vset.pattern.permute.xlu0 2
    %148 = vperm.xlu0 %147, %v133
    %v149 = vpop.permute.xlu0 %148
    %v151 = vadd.f32 %v146, %v149
    %152 = vst [vmem:[#allocation7] sm:$0xff] %v151
    // Predicated region
    $region22: #{tpu_custom_call.1} parent=1 // pred_check
      _
    $region23: #{tpu_custom_call.1} parent=1 // pred_check_branch
      %154 = sbr.rel (0) target = $region25
    $region24: #{tpu_custom_call.1} parent=1 // pred_region
      %s156 = ssub.s32 128, 128
      %157 = vsyncadd [#allocation4], %s156
      %s159 = sshll.u32 [#allocation7], 4
      %s160 = int_to_ptr.vmem [resolvable:$true] %s159
      %162 = dma.vmem_to_hbm [thread:$0]  %s160, 128, %s3, [#allocation4]
    $region25: #{tpu_custom_call.1} parent=1 // pred_fallthru
      _
    // Predicated region
    $region26: #{tpu_custom_call.1} parent=1 // pred_check
      _
    $region27: #{tpu_custom_call.1} parent=1 // pred_check_branch
      %164 = sbr.rel (0) target = $region29
    $region28: #{tpu_custom_call.1} parent=1 // pred_region
      %165 = dma.done [#allocation4], 128
    $region29: #{tpu_custom_call.1} parent=1 // pred_fallthru
      _
    %166 = vsyncpa [#allocation3], 1
    %167 = vsyncpa [#allocation6], 1
    %168 = vsyncpa [#allocation4], 1

</llo_original>
